<compile_context>
chip_gen: v5e
topology: v5e:2x2
jax: 0.10.0
libtpu: 0.0.40
codegen_flags: <defaults>
</compile_context>

<pallas_src>
import functools

import jax
import jax.numpy as jnp
from jax import lax
from jax.experimental import pallas as pl
from jax.experimental.pallas import tpu as pltpu

_NEG_BIG = -1e30  # finite "-inf": masked entries never produce NaNs


def _round_up(x, m):
    return (x + m - 1) // m * m


def _simloss_kernel(*refs, has_row_bias, has_col_bias):
    it = iter(refs)
    t_ref = next(it)                               # (bm, d_pad) normalized * 1/exp(T)
    g_ref = next(it)                               # (bk, d_pad) normalized
    rb_ref = next(it) if has_row_bias else None    # (bm, 1)  0 / -1e30
    cb_ref = next(it) if has_col_bias else None    # (1, bk)  0 / -1e30
    rowlse_ref = next(it)                          # (bm, 1)  per-row logsumexp
    colm_ref = next(it)                            # (1, 1, bk) column partial max
    coll_ref = next(it)                            # (1, 1, bk) column partial sum-exp
    m_r = next(it)                                 # (bm, 1) scratch: running row max
    l_r = next(it)                                 # (bm, 1) scratch: running row sum-exp

    j = pl.program_id(1)

    @pl.when(j == 0)
    def _():
        m_r[...] = jnp.full_like(m_r, _NEG_BIG)
        l_r[...] = jnp.zeros_like(l_r)

    # Logits tile straight off the MXU (operands already normalized / scaled /
    # cast in the wrapper); contract last dims so no transpose copy is needed.
    s = lax.dot_general(t_ref[...], g_ref[...],
                        dimension_numbers=(((1,), (1,)), ((), ())),
                        preferred_element_type=jnp.float32)        # (bm, bk)

    # Padding masks as broadcast bias adds (only emitted when padding exists;
    # hidden under the MXU slot on interior tiles).
    if has_row_bias:
        s = s + rb_ref[...]
    if has_col_bias:
        s = s + cb_ref[...]

    # Single EUP pass per tile, shifted by the tile-global max; both the row
    # (online) and column (partial) statistics are derived from it.
    m_t = jnp.max(jnp.max(s, axis=1, keepdims=True), axis=0, keepdims=True)  # (1,1)
    e = jnp.exp(s - m_t)                                           # (bm, bk)

    bk = e.shape[1]
    colm_ref[...] = jnp.broadcast_to(m_t, (1, 1, bk))
    coll_ref[...] = jnp.sum(e, axis=0, keepdims=True).reshape(1, 1, bk)

    # Row direction: flash-style online LSE across column tiles.
    m_prev = m_r[...]
    m_new = jnp.maximum(m_prev, m_t)
    l_r[...] = (jnp.exp(m_prev - m_new) * l_r[...]
                + jnp.exp(m_t - m_new) * jnp.sum(e, axis=1, keepdims=True))
    m_r[...] = m_new

    @pl.when(j == pl.num_programs(1) - 1)
    def _():
        rowlse_ref[...] = m_r[...] + jnp.log(l_r[...])


def simloss(text_features, graph_features, temperature, *,
            block_m=512, block_k=256, use_bf16_matmul=True):
    """Pallas implementation of SimLoss.forward.  Returns a scalar loss."""
    n, d = text_features.shape
    assert graph_features.shape == (n, d)

    # ---- Prologue (plain XLA, O(N*D)): normalize, fold 1/exp(temperature),
    # ---- target (diagonal) logits, pad / cast MXU operands.
    inv_temp = jnp.exp(-jnp.asarray(temperature, jnp.float32))
    t = text_features.astype(jnp.float32)
    g = graph_features.astype(jnp.float32)
    t_n = t * (lax.rsqrt(jnp.maximum(jnp.sum(t * t, -1, keepdims=True), 1e-30))
               * inv_temp)
    g_n = g * lax.rsqrt(jnp.maximum(jnp.sum(g * g, -1, keepdims=True), 1e-30))
    diag_sum = jnp.sum(t_n * g_n)                  # sum_i logits[i, i]

    d_pad = _round_up(d, 128)
    bm = min(_round_up(block_m, 128), _round_up(n, 8))
    bk = min(_round_up(block_k, 128), _round_up(n, 8))
    mp = _round_up(n, bm)
    kp = _round_up(n, bk)
    nbi, nbj = mp // bm, kp // bk

    in_dtype = jnp.bfloat16 if use_bf16_matmul else jnp.float32

    def pad_to(x, rows):
        if rows != n or d_pad != d:
            x = jnp.pad(x, ((0, rows - n), (0, d_pad - d)))
        return x.astype(in_dtype)

    t_p = pad_to(t_n, mp)
    g_p = pad_to(g_n, kp)

    need_rb = mp != n   # padded text rows must not pollute column sums
    need_cb = kp != n   # padded graph rows must not pollute row LSE

    operands = [t_p, g_p]
    in_specs = [
        pl.BlockSpec((bm, d_pad), lambda i, j: (i, 0)),   # text row tile
        pl.BlockSpec((bk, d_pad), lambda i, j: (j, 0)),   # graph col tile
        # TODO(synk): on v5e consider pipeline_mode=pl.Buffered(3) on the graph
        # spec if profiling shows exposed DMA on the per-step graph fetch.
    ]
    if need_rb:
        row_bias = jnp.where(jnp.arange(mp) < n, 0.0, _NEG_BIG
                             ).astype(jnp.float32).reshape(mp, 1)
        operands.append(row_bias)
        in_specs.append(pl.BlockSpec((bm, 1), lambda i, j: (i, 0)))
    if need_cb:
        col_bias = jnp.where(jnp.arange(kp) < n, 0.0, _NEG_BIG
                             ).astype(jnp.float32).reshape(1, kp)
        operands.append(col_bias)
        in_specs.append(pl.BlockSpec((1, bk), lambda i, j: (0, j)))

    kernel = functools.partial(_simloss_kernel,
                               has_row_bias=need_rb, has_col_bias=need_cb)

    # VMEM budget: double-buffered operand tiles + generous allowance for the
    # (bm, bk) f32 logits temporaries, capped at 3/4 of this chip's VMEM
    # (48 MiB on v7x, 96 MiB on v5e / v6e).
    in_bytes = 2 if use_bf16_matmul else 4
    try:
        vmem_cap = int(pltpu.get_tpu_info().vmem_capacity_bytes)
    except Exception:
        vmem_cap = 64 * 1024 * 1024
    usable = vmem_cap * 3 // 4
    est = (2 * (bm + bk) * d_pad * in_bytes + 10 * bm * bk * 4
           + 8 * (bm + bk) * 4 + (2 << 20))
    vmem_limit = int(min(usable, max(est, 16 * 1024 * 1024)))

    cost = pl.CostEstimate(
        flops=2 * mp * kp * d_pad,
        transcendentals=mp * kp,
        bytes_accessed=(mp * d_pad + nbi * kp * d_pad) * in_bytes
                       + 4 * (mp + 2 * nbi * kp),
    )

    rowlse, colm, coll = pl.pallas_call(
        kernel,
        grid=(nbi, nbj),
        in_specs=in_specs,
        out_specs=(
            pl.BlockSpec((bm, 1), lambda i, j: (i, 0)),      # per-row LSE
            pl.BlockSpec((1, 1, bk), lambda i, j: (i, 0, j)),  # column partial max
            pl.BlockSpec((1, 1, bk), lambda i, j: (i, 0, j)),  # column partial sum-exp
        ),
        out_shape=(
            jax.ShapeDtypeStruct((mp, 1), jnp.float32),
            jax.ShapeDtypeStruct((nbi, 1, kp), jnp.float32),
            jax.ShapeDtypeStruct((nbi, 1, kp), jnp.float32),
        ),
        scratch_shapes=[
            pltpu.VMEM((bm, 1), jnp.float32),   # running row max
            pltpu.VMEM((bm, 1), jnp.float32),   # running row sum-exp
        ],
        compiler_params=pltpu.CompilerParams(
            dimension_semantics=("parallel", "arbitrary"),
            vmem_limit_bytes=vmem_limit,
        ),
        cost_estimate=cost,
    )(*operands)

    # ---- Epilogue (plain XLA, O(nb*N)): merge column partials, assemble loss.
    row_sum = jnp.sum(rowlse[:n, 0])
    m = colm[:, 0, :]                                  # (nbi, kp)
    l = coll[:, 0, :]
    m_glob = jnp.max(m, axis=0)                        # (kp,)
    l_glob = jnp.sum(l * jnp.exp(m - m_glob[None, :]), axis=0)
    col_sum = jnp.sum((m_glob + jnp.log(l_glob))[:n])
    return (row_sum + col_sum - 2.0 * diag_sum) / (2.0 * n)


def simloss_ref(text_features, graph_features, temperature):
    """Pure-JAX reference for correctness checking."""
    g = graph_features / jnp.linalg.norm(graph_features, axis=-1, keepdims=True)
    t = text_features / jnp.linalg.norm(text_features, axis=-1, keepdims=True)
    logits = (t @ g.T) / jnp.exp(temperature)
    n = logits.shape[0]

    def ce(lg):
        lse = jax.nn.logsumexp(lg, axis=-1)
        return jnp.mean(lse - lg[jnp.arange(n), jnp.arange(n)])

    return (ce(logits) + ce(logits.T)) / 2.0


if __name__ == "__main__":
    key = jax.random.PRNGKey(0)
    k1, k2 = jax.random.split(key)

    # Small shape consistent with the module: batch=8, hidden=32.
    N, D = 8, 32
    text = jax.random.normal(k1, (N, D), dtype=jnp.float32)
    graph = jax.random.normal(k2, (N, D), dtype=jnp.float32)
    temperature = jnp.float32(0.07)  # nn.Parameter(torch.ones([]) * 0.07)

    ref = simloss_ref(text, graph, temperature)

    # f32 MXU operands: tight tolerance.
    loss_f32 = simloss(text, graph, temperature, use_bf16_matmul=False)
    jax.block_until_ready(loss_f32)
    assert jnp.allclose(loss_f32, ref, rtol=1e-4, atol=1e-4), (loss_f32, ref)

    # Default path (bf16 MXU operands, f32 accumulation): looser tolerance.
    loss_bf16 = simloss(text, graph, temperature)
    jax.block_until_ready(loss_bf16)
    assert jnp.allclose(loss_bf16, ref, rtol=2e-2, atol=1e-1), (loss_bf16, ref)

    # Multi-tile rectangular path: 2x3 grid, row + column padding masks,
    # online row LSE across column tiles, column-partial merge in JAX.
    k3, k4 = jax.random.split(k2)
    N2, D2 = 333, 72
    text2 = jax.random.normal(k3, (N2, D2), dtype=jnp.float32)
    graph2 = jax.random.normal(k4, (N2, D2), dtype=jnp.float32)
    ref2 = simloss_ref(text2, graph2, temperature)

    loss2 = simloss(text2, graph2, temperature, block_m=256, block_k=128,
                    use_bf16_matmul=False)
    jax.block_until_ready(loss2)
    assert jnp.allclose(loss2, ref2, rtol=1e-4, atol=1e-4), (loss2, ref2)

    loss3 = simloss(text2, graph2, temperature, block_m=256, block_k=128)
    jax.block_until_ready(loss3)
    assert jnp.allclose(loss3, ref2, rtol=2e-2, atol=1e-1), (loss3, ref2)

    print("KERNEL_OK")
</pallas_src>

<mosaic_0001>
module attributes {stable_mosaic.version = 11 : i64} {
  func.func @_simloss_kernel(%arg0: i32, %arg1: i32, %arg2: memref<8x128xf32, #tpu.memory_space<vmem>>, %arg3: memref<8x128xf32, #tpu.memory_space<vmem>>, %arg4: memref<8x1xf32, #tpu.memory_space<vmem>>, %arg5: memref<1x1x8xf32, #tpu.memory_space<vmem>>, %arg6: memref<1x1x8xf32, #tpu.memory_space<vmem>>, %arg7: memref<8x1xf32, #tpu.memory_space<vmem>>, %arg8: memref<8x1xf32, #tpu.memory_space<vmem>>) attributes {dimension_semantics = [#tpu.dimension_semantics<parallel>, #tpu.dimension_semantics<arbitrary>], iteration_bounds = array<i64: 1, 1>, scalar_prefetch = 0 : i64, scratch_operands = 2 : i64, tpu.core_type = #tpu.core_type<tc>, window_params = [{transform_indices = @transform_0, window_bounds = array<i64: 8, 128>}, {transform_indices = @transform_1, window_bounds = array<i64: 8, 128>}, {transform_indices = @transform_2, window_bounds = array<i64: 8, 1>}, {transform_indices = @transform_3, window_bounds = array<i64: 1, 1, 8>}, {transform_indices = @transform_4, window_bounds = array<i64: 1, 1, 8>}]} {
    %c0_i32 = arith.constant 0 : i32
    %0 = arith.cmpi eq, %arg1, %c0_i32 : i32
    %1 = arith.extui %0 : i1 to i32
    %c0_i32_0 = arith.constant 0 : i32
    %2 = arith.cmpi ne, %1, %c0_i32_0 : i32
    scf.if %2 {
      %cst_24 = arith.constant -1.000000e+30 : f32
      %39 = vector.broadcast %cst_24 : f32 to vector<8x1xf32>
      %c0_25 = arith.constant 0 : index
      %c0_26 = arith.constant 0 : index
      %40 = vector.load %arg7[%c0_25, %c0_26] : memref<8x1xf32, #tpu.memory_space<vmem>>, vector<8x1xf32>
      tpu.vector_store %arg7[%c0_25, %c0_26], %39 {strides = array<i32>} : memref<8x1xf32, #tpu.memory_space<vmem>>, vector<8x1xf32>,
      %cst_27 = arith.constant 0.000000e+00 : f32
      %41 = vector.broadcast %cst_27 : f32 to vector<8x1xf32>
      %c0_28 = arith.constant 0 : index
      %c0_29 = arith.constant 0 : index
      %42 = vector.load %arg8[%c0_28, %c0_29] : memref<8x1xf32, #tpu.memory_space<vmem>>, vector<8x1xf32>
      tpu.vector_store %arg8[%c0_28, %c0_29], %41 {strides = array<i32>} : memref<8x1xf32, #tpu.memory_space<vmem>>, vector<8x1xf32>,
    } else {
    }
    %c0 = arith.constant 0 : index
    %c0_1 = arith.constant 0 : index
    %3 = vector.load %arg2[%c0, %c0_1] : memref<8x128xf32, #tpu.memory_space<vmem>>, vector<8x128xf32>
    %c0_2 = arith.constant 0 : index
    %c0_3 = arith.constant 0 : index
    %4 = vector.load %arg3[%c0_2, %c0_3] : memref<8x128xf32, #tpu.memory_space<vmem>>, vector<8x128xf32>
    %cst = arith.constant dense<0.000000e+00> : vector<8x8xf32>
    %5 = tpu.matmul %3, %4, %cst {dimension_numbers = #tpu.dot_dimension_numbers<[1], [1], [0], [0], [0, 0, 1, 0], [], []>} : vector<8x128xf32>, vector<8x128xf32>, vector<8x8xf32> -> vector<8x8xf32>
    %cst_4 = arith.constant dense<0xFF800000> : vector<8xf32>
    %6 = vector.multi_reduction <maximumf>, %5, %cst_4 [1] : vector<8x8xf32> to vector<8xf32>
    %7 = vector.shape_cast %6 : vector<8xf32> to vector<8x1xf32>
    %cst_5 = arith.constant dense<0xFF800000> : vector<1xf32>
    %8 = vector.multi_reduction <maximumf>, %7, %cst_5 [0] : vector<8x1xf32> to vector<1xf32>
    %9 = vector.shape_cast %8 : vector<1xf32> to vector<1x1xf32>
    %10 = vector.broadcast %9 : vector<1x1xf32> to vector<8x8xf32>
    %11 = arith.subf %5, %10 : vector<8x8xf32>
    %12 = math.exp %11 : vector<8x8xf32>
    %13 = vector.shape_cast %9 : vector<1x1xf32> to vector<1x1x1xf32>
    %14 = vector.broadcast %13 : vector<1x1x1xf32> to vector<1x1x8xf32>
    %c0_6 = arith.constant 0 : index
    %c0_7 = arith.constant 0 : index
    %c0_8 = arith.constant 0 : index
    %15 = vector.load %arg5[%c0_6, %c0_7, %c0_8] : memref<1x1x8xf32, #tpu.memory_space<vmem>>, vector<1x1x8xf32>
    tpu.vector_store %arg5[%c0_6, %c0_7, %c0_8], %14 {strides = array<i32>} : memref<1x1x8xf32, #tpu.memory_space<vmem>>, vector<1x1x8xf32>,
    %cst_9 = arith.constant dense<0.000000e+00> : vector<8xf32>
    %16 = vector.multi_reduction <add>, %12, %cst_9 [0] : vector<8x8xf32> to vector<8xf32>
    %17 = vector.shape_cast %16 : vector<8xf32> to vector<1x8xf32>
    %18 = vector.shape_cast %17 : vector<1x8xf32> to vector<1x1x8xf32>
    %c0_10 = arith.constant 0 : index
    %c0_11 = arith.constant 0 : index
    %c0_12 = arith.constant 0 : index
    %19 = vector.load %arg6[%c0_10, %c0_11, %c0_12] : memref<1x1x8xf32, #tpu.memory_space<vmem>>, vector<1x1x8xf32>
    tpu.vector_store %arg6[%c0_10, %c0_11, %c0_12], %18 {strides = array<i32>} : memref<1x1x8xf32, #tpu.memory_space<vmem>>, vector<1x1x8xf32>,
    %c0_13 = arith.constant 0 : index
    %c0_14 = arith.constant 0 : index
    %20 = vector.load %arg7[%c0_13, %c0_14] : memref<8x1xf32, #tpu.memory_space<vmem>>, vector<8x1xf32>
    %21 = vector.broadcast %9 : vector<1x1xf32> to vector<8x1xf32>
    %22 = arith.maximumf %20, %21 : vector<8x1xf32>
    %23 = arith.subf %20, %22 : vector<8x1xf32>
    %24 = math.exp %23 : vector<8x1xf32>
    %c0_15 = arith.constant 0 : index
    %c0_16 = arith.constant 0 : index
    %25 = vector.load %arg8[%c0_15, %c0_16] : memref<8x1xf32, #tpu.memory_space<vmem>>, vector<8x1xf32>
    %26 = arith.mulf %24, %25 : vector<8x1xf32>
    %27 = vector.broadcast %9 : vector<1x1xf32> to vector<8x1xf32>
    %28 = arith.subf %27, %22 : vector<8x1xf32>
    %29 = math.exp %28 : vector<8x1xf32>
    %cst_17 = arith.constant dense<0.000000e+00> : vector<8xf32>
    %30 = vector.multi_reduction <add>, %12, %cst_17 [1] : vector<8x8xf32> to vector<8xf32>
    %31 = vector.shape_cast %30 : vector<8xf32> to vector<8x1xf32>
    %32 = arith.mulf %29, %31 : vector<8x1xf32>
    %33 = arith.addf %26, %32 : vector<8x1xf32>
    %c0_18 = arith.constant 0 : index
    %c0_19 = arith.constant 0 : index
    %34 = vector.load %arg8[%c0_18, %c0_19] : memref<8x1xf32, #tpu.memory_space<vmem>>, vector<8x1xf32>
    tpu.vector_store %arg8[%c0_18, %c0_19], %33 {strides = array<i32>} : memref<8x1xf32, #tpu.memory_space<vmem>>, vector<8x1xf32>,
    %c0_20 = arith.constant 0 : index
    %c0_21 = arith.constant 0 : index
    %35 = vector.load %arg7[%c0_20, %c0_21] : memref<8x1xf32, #tpu.memory_space<vmem>>, vector<8x1xf32>
    tpu.vector_store %arg7[%c0_20, %c0_21], %22 {strides = array<i32>} : memref<8x1xf32, #tpu.memory_space<vmem>>, vector<8x1xf32>,
    %c0_i32_22 = arith.constant 0 : i32
    %36 = arith.cmpi eq, %arg1, %c0_i32_22 : i32
    %37 = arith.extui %36 : i1 to i32
    %c0_i32_23 = arith.constant 0 : i32
    %38 = arith.cmpi ne, %37, %c0_i32_23 : i32
    scf.if %38 {
      %c0_24 = arith.constant 0 : index
      %c0_25 = arith.constant 0 : index
      %39 = vector.load %arg7[%c0_24, %c0_25] : memref<8x1xf32, #tpu.memory_space<vmem>>, vector<8x1xf32>
      %c0_26 = arith.constant 0 : index
      %c0_27 = arith.constant 0 : index
      %40 = vector.load %arg8[%c0_26, %c0_27] : memref<8x1xf32, #tpu.memory_space<vmem>>, vector<8x1xf32>
      %41 = math.log %40 : vector<8x1xf32>
      %42 = arith.addf %39, %41 : vector<8x1xf32>
      %c0_28 = arith.constant 0 : index
      %c0_29 = arith.constant 0 : index
      %43 = vector.load %arg4[%c0_28, %c0_29] : memref<8x1xf32, #tpu.memory_space<vmem>>, vector<8x1xf32>
      tpu.vector_store %arg4[%c0_28, %c0_29], %42 {strides = array<i32>} : memref<8x1xf32, #tpu.memory_space<vmem>>, vector<8x1xf32>,
    } else {
    }
    return
  }
  func.func @transform_0(%arg0: i32, %arg1: i32) -> (i32, i32) {
    %c0_i32 = arith.constant 0 : i32
    %c0_i32_0 = arith.constant 0 : i32
    return %arg0, %c0_i32 : i32, i32
  }
  func.func @transform_1(%arg0: i32, %arg1: i32) -> (i32, i32) {
    %c0_i32 = arith.constant 0 : i32
    %c0_i32_0 = arith.constant 0 : i32
    return %arg1, %c0_i32 : i32, i32
  }
  func.func @transform_2(%arg0: i32, %arg1: i32) -> (i32, i32) {
    %c0_i32 = arith.constant 0 : i32
    %c0_i32_0 = arith.constant 0 : i32
    return %arg0, %c0_i32 : i32, i32
  }
  func.func @transform_3(%arg0: i32, %arg1: i32) -> (i32, i32, i32) {
    %c0_i32 = arith.constant 0 : i32
    %c0_i32_0 = arith.constant 0 : i32
    return %arg0, %c0_i32, %arg1 : i32, i32, i32
  }
  func.func @transform_4(%arg0: i32, %arg1: i32) -> (i32, i32, i32) {
    %c0_i32 = arith.constant 0 : i32
    %c0_i32_0 = arith.constant 0 : i32
    return %arg0, %c0_i32, %arg1 : i32, i32, i32
  }
}

</mosaic_0001>

<llo_original>
// kernel: tpu_custom_call.1
$region0: #{tpu_custom_call.1}
  #allocation0 [shape = 'u32[]', space=smem, size = 0x4, offset = 0x4, fixed_abs, tag = 'smem constant byte address 0x4 - core index']
  #allocation1 [shape = 'u32[72,128]{1,0:T(1,128)}', space=vmem, size = 0x9000, scoped, tag = 'internal scratch']
  #allocation2 [shape = 'f32[8,1]{1,0:T(8,128)}', space=vmem, size = 0x1000, scoped, tag = 'scratch operand']
  #allocation3 [shape = 'f32[8,1]{1,0:T(8,128)}', space=vmem, size = 0x1000, scoped, tag = 'scratch operand']
  %s0 = inlined_call_operand.hbm [shape: f32[8,128], index: 0, kind: input, shape index: {}]
  %s1 = inlined_call_operand.hbm [shape: f32[8,128], index: 1, kind: input, shape index: {}]
  %s2 = inlined_call_operand.vmem [shape: f32[8,1], index: 2, kind: output, shape index: {0}]
  %s3 = inlined_call_operand.hbm [shape: f32[1,1,8], index: 3, kind: output, shape index: {1}]
  %s4 = inlined_call_operand.hbm [shape: f32[1,1,8], index: 4, kind: output, shape index: {2}]
  %5 = xla_tuple %s2, %s3, %s4
  %s6 = sld [smem:[#allocation0]]
  $region50: #{tpu_custom_call.1} parent=0
    _
  %s8 = ssub.s32 1, %s6
  %s9 = scalar_select 0, %s8, %s6
  $region1: #{tpu_custom_call.1} parent=0
    #allocation4 [shape = 'u8[4096]{0}', space=vmem, size = 0x1000, scoped, tag = 'input window, operand 0, single buffered']
    #allocation5 [shape = 's32[1]{0}', space=sflag, size = 0x4, scoped, tag = 'scoped memory for tpu_custom_call.1']
    #allocation6 [shape = 's32[1]{0}', space=sflag, size = 0x4, scoped, tag = 'scoped memory for tpu_custom_call.1']
    #allocation7 [shape = 'u8[4096]{0}', space=vmem, size = 0x1000, scoped, tag = 'input window, operand 1, single buffered']
    #allocation8 [shape = 's32[1]{0}', space=sflag, size = 0x4, scoped, tag = 'scoped memory for tpu_custom_call.1']
    #allocation9 [shape = 'u8[512]{0}', space=vmem, size = 0x400, scoped, tag = 'output window, operand 1, single buffered']
    #allocation10 [shape = 'u8[512]{0}', space=vmem, size = 0x400, scoped, tag = 'output window, operand 2, single buffered']
    #allocation11 [shape = 's32[1]{0}', space=sflag, size = 0x4, scoped, tag = 'scoped memory for tpu_custom_call.1']
    %10 = vsyncpa [#allocation5], 0
    %11 = vsyncpa [#allocation8], 0
    %12 = vsyncpa [#allocation6], 0
    %13 = vsyncpa [#allocation11], 0
    // Predicated region
    $region2: #{tpu_custom_call.1} parent=1 // pred_check
      _
    $region3: #{tpu_custom_call.1} parent=1 // pred_check_branch
      %15 = sbr.rel (0) target = $region5
    $region4: #{tpu_custom_call.1} parent=1 // pred_region
      %17 = vsyncadd [#allocation5], 0
      %s19 = sshll.u32 %s0, 4
      %s20 = int_to_ptr.hbm [resolvable:$true] %s19
      %s21 = sshll.u32 [#allocation4], 4
      %s22 = int_to_ptr.vmem [resolvable:$true] %s21
      %24 = dma.hbm_to_vmem [thread:$0]  %s20, 128, %s22, [#allocation5]
    $region5: #{tpu_custom_call.1} parent=1 // pred_fallthru
      _
    // Predicated region
    $region6: #{tpu_custom_call.1} parent=1 // pred_check
      _
    $region7: #{tpu_custom_call.1} parent=1 // pred_check_branch
      %26 = sbr.rel (0) target = $region9
    $region8: #{tpu_custom_call.1} parent=1 // pred_region
      %28 = vsyncadd [#allocation8], 0
      %s30 = sshll.u32 %s1, 4
      %s31 = int_to_ptr.hbm [resolvable:$true] %s30
      %s32 = sshll.u32 [#allocation7], 4
      %s33 = int_to_ptr.vmem [resolvable:$true] %s32
      %35 = dma.hbm_to_vmem [thread:$0]  %s31, 128, %s33, [#allocation8]
    $region9: #{tpu_custom_call.1} parent=1 // pred_fallthru
      _
    // Predicated region
    $region10: #{tpu_custom_call.1} parent=1 // pred_check
      _
    $region11: #{tpu_custom_call.1} parent=1 // pred_check_branch
      %37 = sbr.rel (0) target = $region13
    $region12: #{tpu_custom_call.1} parent=1 // pred_region
      %39 = dma.done [#allocation5], 128
    $region13: #{tpu_custom_call.1} parent=1 // pred_fallthru
      _
    // Predicated region
    $region14: #{tpu_custom_call.1} parent=1 // pred_check
      _
    $region15: #{tpu_custom_call.1} parent=1 // pred_check_branch
      %41 = sbr.rel (0) target = $region17
    $region16: #{tpu_custom_call.1} parent=1 // pred_region
      %43 = dma.done [#allocation8], 128
    $region17: #{tpu_custom_call.1} parent=1 // pred_fallthru
      _
    %p44 = scmp.eq.s32.totalorder 0, 0
    // Predicated region
    $region18: #{tpu_custom_call.1} parent=1 // pred_check
      %p45 = pneg %p44
    $region19: #{tpu_custom_call.1} parent=1 // pred_check_branch
      %47 = sbr.rel (%p45) target = $region21
    $region20: #{tpu_custom_call.1} parent=1 // pred_region
      %vm48 = vcmask 7168
      %49 = vst.msk [vmem:[#allocation2] sm:$0xff] %vm48, -1e+30
      %50 = vst.msk [vmem:[#allocation3] sm:$0xff] %vm48, 0.0
    $region21: #{tpu_custom_call.1} parent=1 // pred_fallthru
      _
    %v51 = vld [vmem:[#allocation4] sm:$0xff]
    %v52 = vld [vmem:[#allocation7] sm:$0xff]
    %53 = vmatpush.xpose.msra.mxu0 0.0
    %54 = vmatpush.xpose.msra.mxu0 0.0
    %55 = vmatpush.xpose.msra.mxu0 0.0
    %56 = vmatpush.xpose.msra.mxu0 0.0
    %57 = vmatpush.xpose.msra.mxu0 0.0
    %58 = vmatpush.xpose.msra.mxu0 0.0
    %59 = vmatpush.xpose.msra.mxu0 0.0
    %60 = vmatpush.xpose.msra.mxu0 0.0
    %61 = vmatpush.xpose.msra.mxu0 0.0
    %62 = vmatpush.xpose.msra.mxu0 0.0
    %63 = vmatpush.xpose.msra.mxu0 0.0
    %64 = vmatpush.xpose.msra.mxu0 0.0
    %65 = vmatpush.xpose.msra.mxu0 0.0
    %66 = vmatpush.xpose.msra.mxu0 0.0
    %67 = vmatpush.xpose.msra.mxu0 0.0
    %68 = vmatpush.xpose.msra.mxu0 %v52
    %69 = vmatmul.f32.gmra.mxu0 %v51
    %v70 = vpop.f32.mrf.mxu0
    %v71 = vadd.f32 0.0, %v70
    %72 = vdwg.mxu0
    %vm73 = vcmask 64512
    %v74 = vsel %vm73, %v71, -inf
    %75 = vmax.xlane.f32.xlu0 %v74
    %v76 = vpop.xlane.xlu0 %75
    %v77 = vrot.slane %v76, 4
    %v78 = vmax.f32 %v76, %v77
    %v79 = vrot.slane %v78, 2
    %v80 = vmax.f32 %v78, %v79
    %v81 = vrot.slane %v80, 1
    %v82 = vmax.f32 %v80, %v81
    %v83 = vsub.f32 %v71, %v82
    %v84 = vmul.f32 %v83, 1.442695
    %v85 = vpow.pop %v84
    %vm86 = vcmask 57344
    %87 = vst.msk [vmem:[#allocation9] sm:$0x1] %vm86, %v82
    %v88 = vsel %vm73, %v85, 0.0
    %v89 = vrot.slane %v88, 4
    %v90 = vadd.f32 %v88, %v89
    %v91 = vrot.slane %v90, 2
    %v92 = vadd.f32 %v90, %v91
    %v93 = vrot.slane %v92, 1
    %v94 = vadd.f32 %v92, %v93
    %95 = vst.msk [vmem:[#allocation10] sm:$0x1] %vm86, %v94
    %v96 = vld [vmem:[#allocation2] sm:$0xff]
    %v97 = vmax.f32 %v96, %v82
    %v98 = vsub.f32 %v96, %v97
    %v99 = vmul.f32 %v98, 1.442695
    %v100 = vpow.pop %v99
    %v101 = vld [vmem:[#allocation3] sm:$0xff]
    %v102 = vmul.f32 %v100, %v101
    %v103 = vsub.f32 %v82, %v97
    %v104 = vmul.f32 %v103, 1.442695
    %v105 = vpow.pop %v104
    %106 = vadd.xlane.f32.xlu0 %v88
    %v107 = vpop.xlane.xlu0 %106
    %v108 = vmul.f32 %v105, %v107
    %v109 = vadd.f32 %v102, %v108
    %vm110 = vcmask 7168
    %111 = vst.msk [vmem:[#allocation3] sm:$0xff] %vm110, %v109
    %112 = vst.msk [vmem:[#allocation2] sm:$0xff] %vm110, %v97
    // Predicated region
    $region22: #{tpu_custom_call.1} parent=1 // pred_check
      %p113 = pneg %p44
    $region23: #{tpu_custom_call.1} parent=1 // pred_check_branch
      %115 = sbr.rel (%p113) target = $region25
    $region24: #{tpu_custom_call.1} parent=1 // pred_region
      %v116 = vld [vmem:[#allocation2] sm:$0xff]
      %v117 = vld [vmem:[#allocation3] sm:$0xff]
      %v118 = vlog2.pop %v117
      %v119 = vmul.f32 %v118, 0.6931472
      %v120 = vadd.f32 %v116, %v119
      %121 = vst.msk [vmem:[%s2] sm:$0xff] %vm110, %v120
    $region25: #{tpu_custom_call.1} parent=1 // pred_fallthru
      _
    // Predicated region
    $region26: #{tpu_custom_call.1} parent=1 // pred_check
      _
    $region27: #{tpu_custom_call.1} parent=1 // pred_check_branch
      %123 = sbr.rel (0) target = $region29
    $region28: #{tpu_custom_call.1} parent=1 // pred_region
      _
    $region29: #{tpu_custom_call.1} parent=1 // pred_fallthru
      _
    // Predicated region
    $region30: #{tpu_custom_call.1} parent=1 // pred_check
      _
    $region31: #{tpu_custom_call.1} parent=1 // pred_check_branch
      %125 = sbr.rel (0) target = $region33
    $region32: #{tpu_custom_call.1} parent=1 // pred_region
      %127 = vsyncadd [#allocation6], 0
      %s129 = sshll.u32 [#allocation9], 4
      %s130 = int_to_ptr.vmem [resolvable:$true] %s129
      %s131 = sshll.u32 %s3, 4
      %s132 = int_to_ptr.hbm [resolvable:$true] %s131
      %134 = dma.vmem_to_hbm [thread:$0]  %s130, 16, %s132, [#allocation6]
    $region33: #{tpu_custom_call.1} parent=1 // pred_fallthru
      _
    // Predicated region
    $region34: #{tpu_custom_call.1} parent=1 // pred_check
      _
    $region35: #{tpu_custom_call.1} parent=1 // pred_check_branch
      %136 = sbr.rel (0) target = $region37
    $region36: #{tpu_custom_call.1} parent=1 // pred_region
      %138 = vsyncadd [#allocation11], 0
      %s140 = sshll.u32 [#allocation10], 4
      %s141 = int_to_ptr.vmem [resolvable:$true] %s140
      %s142 = sshll.u32 %s4, 4
      %s143 = int_to_ptr.hbm [resolvable:$true] %s142
      %145 = dma.vmem_to_hbm [thread:$0]  %s141, 16, %s143, [#allocation11]
    $region37: #{tpu_custom_call.1} parent=1 // pred_fallthru
      _
    // Predicated region
    $region38: #{tpu_custom_call.1} parent=1 // pred_check
      _
    $region39: #{tpu_custom_call.1} parent=1 // pred_check_branch
      %147 = sbr.rel (0) target = $region41
    $region40: #{tpu_custom_call.1} parent=1 // pred_region
      _
    $region41: #{tpu_custom_call.1} parent=1 // pred_fallthru
      _
    // Predicated region
    $region42: #{tpu_custom_call.1} parent=1 // pred_check
      _
    $region43: #{tpu_custom_call.1} parent=1 // pred_check_branch
      %149 = sbr.rel (0) target = $region45
    $region44: #{tpu_custom_call.1} parent=1 // pred_region
      %151 = dma.done [#allocation6], 16
    $region45: #{tpu_custom_call.1} parent=1 // pred_fallthru
      _
    // Predicated region
    $region46: #{tpu_custom_call.1} parent=1 // pred_check
      _
    $region47: #{tpu_custom_call.1} parent=1 // pred_check_branch
      %153 = sbr.rel (0) target = $region49
    $region48: #{tpu_custom_call.1} parent=1 // pred_region
      %155 = dma.done [#allocation11], 16
    $region49: #{tpu_custom_call.1} parent=1 // pred_fallthru
      _
    %156 = vsyncpa [#allocation5], 1
    %157 = vsyncpa [#allocation8], 1
    %158 = vsyncpa [#allocation6], 1
    %159 = vsyncpa [#allocation11], 1

</llo_original>
